<compile_context>
chip_gen: v5e
topology: v5e:2x2
jax: 0.10.0
libtpu: 0.0.40
codegen_flags: <defaults>
</compile_context>

<pallas_src>
import functools

import jax
import jax.numpy as jnp
from jax.experimental import pallas as pl
from jax.experimental.pallas import tpu as pltpu


def _smooth_loss_kernel(x_ref, o_ref, acc_ref, *, T, TL, inv_t):
    """One (T, TL) lane-dense tile: accumulate |x - mean_col(x)| into acc."""
    i = pl.program_id(1)  # position along the reduction ("arbitrary") sweep

    @pl.when(i == 0)
    def _init():
        acc_ref[...] = jnp.zeros_like(acc_ref)

    # (T, TL) tile, native dtype in HBM -> f32 in VMEM.
    x = x_ref[...].astype(jnp.float32)
    # Per-sample mean = sublane-axis sum * (1/T).  Zero-padded columns give
    # a 0 mean and a 0 deviation, so they contribute exactly nothing.
    col_mean = jnp.sum(x, axis=0, keepdims=True) * jnp.float32(inv_t)  # (1, TL)
    acc_ref[...] += jnp.abs(x - col_mean)  # pure VPU, overlaps the next DMA

    @pl.when(i == pl.num_programs(1) - 1)
    def _finalize():
        acc = acc_ref[...]  # (T, TL) f32
        if T % 8 == 0 and T >= 8:
            # Fold sublane groups with plain VPU adds (no XLU reduce here).
            part8 = acc[0:8, :]
            for r in range(1, T // 8):
                part8 = part8 + acc[r * 8:(r + 1) * 8, :]
        else:
            # General T: one sublane reduce, placed in sublane 0 of the slab.
            colsum = jnp.sum(acc, axis=0, keepdims=True)  # (1, TL)
            rid = jax.lax.broadcasted_iota(jnp.int32, (8, TL), 0)
            part8 = jnp.where(rid == 0,
                              jnp.broadcast_to(colsum, (8, TL)),
                              jnp.float32(0.0))
        o_ref[...] = part8  # lane-dense (8, TL) store, once per split


def _auto_block_cols(T, B, dtype):
    """Padding-aware lane-tile sizing (~<=1-2 MiB of *padded* VMEM per buffer)."""
    itemsize = jnp.dtype(dtype).itemsize
    sublane_mult = max(8, 32 // max(itemsize, 1))   # f32:8, bf16:16, int8/fp8:32
    t_pad = -(-T // sublane_mult) * sublane_mult    # padded sublane extent of one tile
    target_bytes = 2 * 1024 * 1024                  # padded bytes per input buffer
    tl = target_bytes // max(t_pad * itemsize, 1)
    tl = (tl // 128) * 128
    tl = max(128, min(tl, 16384))                   # cap so f32 acc/temps stay small
    b128 = -(-B // 128) * 128                       # never tile wider than the data
    return max(128, min(tl, b128))


def smooth_loss(outputs: jax.Array, *, block_cols: int | None = None,
                force_pallas: bool = False,
                min_pallas_elements: int = 1 << 20) -> jax.Array:
    """JAX/Pallas equivalent of mySmooth_loss.forward for a 2-D (B, T) input."""
    assert outputs.ndim == 2, "expected (B, T) input"
    B, T = outputs.shape

    # Below ~1M elements the fixed pallas_call overhead dominates; plain XLA
    # fuses this into a handful of VPU ops.  Keep the kernel for streaming B.
    if not force_pallas and B * T < min_pallas_elements:
        return smooth_loss_ref(outputs)

    if block_cols is None:
        TL = _auto_block_cols(T, B, outputs.dtype)
    else:
        TL = max(128, (int(block_cols) // 128) * 128)

    nb = pl.cdiv(B, TL)                 # total lane-tiles
    nsplit = 2 if nb >= 4 else 1        # TODO(synk): query the actual TC count per chip
    nbps = pl.cdiv(nb, nsplit)          # blocks per split (reduction sweep length)
    Bp = nsplit * nbps * TL             # padded batch (lane) extent

    # Lane-dense layout: batch on the lane axis, per-sample mean over sublanes.
    # The zero-pad is fused into the same relayout pass and removes the need
    # for any in-kernel masking (zero columns contribute exactly 0).
    x2 = jnp.pad(jnp.transpose(outputs), ((0, 0), (0, Bp - B)))   # (T, Bp), native dtype

    kernel = functools.partial(_smooth_loss_kernel, T=T, TL=TL, inv_t=float(1.0 / T))
    partials = pl.pallas_call(
        kernel,
        out_shape=jax.ShapeDtypeStruct((nsplit, 8, TL), jnp.float32),
        grid=(nsplit, nbps),
        in_specs=[pl.BlockSpec((T, TL), lambda s, i, nbps=nbps: (0, s * nbps + i))],
        out_specs=pl.BlockSpec((None, 8, TL), lambda s, i: (s, 0, 0)),
        scratch_shapes=[pltpu.VMEM((T, TL), jnp.float32)],
        compiler_params=pltpu.CompilerParams(
            dimension_semantics=("parallel", "arbitrary")),
    )(x2)

    # Single tiny reduction + global 1/(B*T) normalization in the wrapper.
    return jnp.sum(partials) * jnp.float32(1.0 / (B * T))


def smooth_loss_ref(outputs: jax.Array) -> jax.Array:
    """Pure-JAX reference (matches the torch module)."""
    x = outputs.astype(jnp.float32)
    m = jnp.mean(x, axis=1, keepdims=True)
    return jnp.mean(jnp.abs(x - m))


if __name__ == "__main__":
    key = jax.random.PRNGKey(0)
    k1, k2, k3 = jax.random.split(key, 3)

    # 1) RhythmNet-style toy shape: (batch, seq) per-clip HR estimates.
    x1 = jax.random.normal(k1, (4, 16), dtype=jnp.float32)
    l1 = jax.block_until_ready(smooth_loss(x1, force_pallas=True))
    r1 = jax.block_until_ready(smooth_loss_ref(x1))
    assert jnp.allclose(l1, r1, rtol=2e-5, atol=1e-5), (l1, r1)

    # 2) Multi-block streaming sweep with a zero-padded partial last tile;
    #    bf16 in HBM, f32 accumulation in-kernel.
    x2 = jax.random.normal(k2, (200, 16), dtype=jnp.float32).astype(jnp.bfloat16)
    l2 = jax.block_until_ready(smooth_loss(x2, block_cols=128, force_pallas=True))
    r2 = jax.block_until_ready(smooth_loss_ref(x2))
    assert jnp.allclose(l2, r2, rtol=2e-5, atol=1e-5), (l2, r2)

    # 3) Two-way "parallel" split (dual-TC path on v7x) + T not a multiple of 8.
    x3 = jax.random.normal(k3, (600, 12), dtype=jnp.float32)
    l3 = jax.block_until_ready(smooth_loss(x3, block_cols=128, force_pallas=True))
    r3 = jax.block_until_ready(smooth_loss_ref(x3))
    assert jnp.allclose(l3, r3, rtol=2e-5, atol=1e-5), (l3, r3)

    # 4) Default entry point on a tiny input -> plain-XLA bypass.
    l4 = jax.block_until_ready(smooth_loss(x1))
    assert jnp.allclose(l4, r1, rtol=2e-5, atol=1e-5), (l4, r1)

    print("KERNEL_OK")
</pallas_src>

<mosaic_0001>
module attributes {stable_mosaic.version = 11 : i64} {
  func.func @_smooth_loss_kernel(%arg0: i32, %arg1: i32, %arg2: memref<16x128xf32, #tpu.memory_space<vmem>>, %arg3: memref<1x8x128xf32, #tpu.memory_space<vmem>>, %arg4: memref<16x128xf32, #tpu.memory_space<vmem>>) attributes {dimension_semantics = [#tpu.dimension_semantics<parallel>, #tpu.dimension_semantics<arbitrary>], iteration_bounds = array<i64: 1, 1>, scalar_prefetch = 0 : i64, scratch_operands = 1 : i64, tpu.core_type = #tpu.core_type<tc>, window_params = [{transform_indices = @transform_0, window_bounds = array<i64: 16, 128>}, {transform_indices = @transform_1, window_bounds = array<i64: 1, 8, 128>}]} {
    %c0_i32 = arith.constant 0 : i32
    %0 = arith.cmpi eq, %arg1, %c0_i32 : i32
    %1 = arith.extui %0 : i1 to i32
    %c0_i32_0 = arith.constant 0 : i32
    %2 = arith.cmpi ne, %1, %c0_i32_0 : i32
    scf.if %2 {
      %cst_9 = arith.constant 0.000000e+00 : f32
      %17 = vector.broadcast %cst_9 : f32 to vector<16x128xf32>
      %c0_10 = arith.constant 0 : index
      %c0_11 = arith.constant 0 : index
      %18 = vector.load %arg4[%c0_10, %c0_11] : memref<16x128xf32, #tpu.memory_space<vmem>>, vector<16x128xf32>
      tpu.vector_store %arg4[%c0_10, %c0_11], %17 {strides = array<i32>} : memref<16x128xf32, #tpu.memory_space<vmem>>, vector<16x128xf32>,
    } else {
    }
    %c0 = arith.constant 0 : index
    %c0_1 = arith.constant 0 : index
    %3 = vector.load %arg2[%c0, %c0_1] : memref<16x128xf32, #tpu.memory_space<vmem>>, vector<16x128xf32>
    %cst = arith.constant dense<0.000000e+00> : vector<128xf32>
    %4 = vector.multi_reduction <add>, %3, %cst [0] : vector<16x128xf32> to vector<128xf32>
    %5 = vector.shape_cast %4 : vector<128xf32> to vector<1x128xf32>
    %cst_2 = arith.constant 6.250000e-02 : f32
    %6 = vector.broadcast %cst_2 : f32 to vector<1x128xf32>
    %7 = arith.mulf %5, %6 : vector<1x128xf32>
    %c0_3 = arith.constant 0 : index
    %c0_4 = arith.constant 0 : index
    %8 = vector.load %arg4[%c0_3, %c0_4] : memref<16x128xf32, #tpu.memory_space<vmem>>, vector<16x128xf32>
    %9 = vector.broadcast %7 : vector<1x128xf32> to vector<16x128xf32>
    %10 = arith.subf %3, %9 : vector<16x128xf32>
    %11 = math.absf %10 : vector<16x128xf32>
    %12 = arith.addf %8, %11 : vector<16x128xf32>
    %c0_5 = arith.constant 0 : index
    %c0_6 = arith.constant 0 : index
    %13 = vector.load %arg4[%c0_5, %c0_6] : memref<16x128xf32, #tpu.memory_space<vmem>>, vector<16x128xf32>
    tpu.vector_store %arg4[%c0_5, %c0_6], %12 {strides = array<i32>} : memref<16x128xf32, #tpu.memory_space<vmem>>, vector<16x128xf32>,
    %c0_i32_7 = arith.constant 0 : i32
    %14 = arith.cmpi eq, %arg1, %c0_i32_7 : i32
    %15 = arith.extui %14 : i1 to i32
    %c0_i32_8 = arith.constant 0 : i32
    %16 = arith.cmpi ne, %15, %c0_i32_8 : i32
    scf.if %16 {
      %c0_9 = arith.constant 0 : index
      %c0_10 = arith.constant 0 : index
      %17 = vector.load %arg4[%c0_9, %c0_10] : memref<16x128xf32, #tpu.memory_space<vmem>>, vector<16x128xf32>
      %18 = vector.extract_strided_slice %17 {offsets = [0, 0], sizes = [8, 128], strides = [1, 1]} : vector<16x128xf32> to vector<8x128xf32>
      %19 = vector.extract_strided_slice %17 {offsets = [8, 0], sizes = [8, 128], strides = [1, 1]} : vector<16x128xf32> to vector<8x128xf32>
      %20 = arith.addf %18, %19 : vector<8x128xf32>
      %c0_11 = arith.constant 0 : index
      %c0_12 = arith.constant 0 : index
      %c0_13 = arith.constant 0 : index
      %21 = vector.load %arg3[%c0_11, %c0_12, %c0_13] : memref<1x8x128xf32, #tpu.memory_space<vmem>>, vector<1x8x128xf32>
      %22 = vector.shape_cast %21 : vector<1x8x128xf32> to vector<8x128xf32>
      %23 = vector.shape_cast %20 : vector<8x128xf32> to vector<1x8x128xf32>
      tpu.vector_store %arg3[%c0_11, %c0_12, %c0_13], %23 {strides = array<i32>} : memref<1x8x128xf32, #tpu.memory_space<vmem>>, vector<1x8x128xf32>,
    } else {
    }
    return
  }
  func.func @transform_0(%arg0: i32, %arg1: i32) -> (i32, i32) {
    %c1_i32 = arith.constant 1 : i32
    %0 = arith.muli %arg0, %c1_i32 : i32
    %1 = arith.addi %0, %arg1 : i32
    %c0_i32 = arith.constant 0 : i32
    %c0_i32_0 = arith.constant 0 : i32
    return %c0_i32, %1 : i32, i32
  }
  func.func @transform_1(%arg0: i32, %arg1: i32) -> (i32, i32, i32) {
    %c0_i32 = arith.constant 0 : i32
    %c0_i32_0 = arith.constant 0 : i32
    %c0_i32_1 = arith.constant 0 : i32
    return %arg0, %c0_i32, %c0_i32_0 : i32, i32, i32
  }
}

</mosaic_0001>

<llo_original>
// kernel: tpu_custom_call.1
$region0: #{tpu_custom_call.1}
  #allocation0 [shape = 'u32[]', space=smem, size = 0x4, offset = 0x4, fixed_abs, tag = 'smem constant byte address 0x4 - core index']
  #allocation1 [shape = 'u32[72,128]{1,0:T(1,128)}', space=vmem, size = 0x9000, scoped, tag = 'internal scratch']
  #allocation2 [shape = 'f32[16,128]{1,0:T(8,128)}', space=vmem, size = 0x2000, scoped, tag = 'scratch operand']
  %s0 = inlined_call_operand.hbm [shape: f32[16,128], index: 0, kind: input, shape index: {}]
  %s1 = inlined_call_operand.hbm [shape: f32[1,8,128], index: 1, kind: output, shape index: {}]
  %s2 = sld [smem:[#allocation0]]
  $region26: #{tpu_custom_call.1} parent=0
    _
  %s4 = ssub.s32 1, %s2
  %s5 = scalar_select 0, %s4, %s2
  $region1: #{tpu_custom_call.1} parent=0
    #allocation3 [shape = 'u8[8192]{0}', space=vmem, size = 0x2000, scoped, tag = 'input window, operand 0, single buffered']
    #allocation4 [shape = 's32[1]{0}', space=sflag, size = 0x4, scoped, tag = 'scoped memory for tpu_custom_call.1']
    #allocation5 [shape = 's32[1]{0}', space=sflag, size = 0x4, scoped, tag = 'scoped memory for tpu_custom_call.1']
    #allocation6 [shape = 'u8[4096]{0}', space=vmem, size = 0x1000, scoped, tag = 'output window, operand 0, single buffered']
    %6 = vsyncpa [#allocation4], 0
    %7 = vsyncpa [#allocation5], 0
    // Predicated region
    $region2: #{tpu_custom_call.1} parent=1 // pred_check
      _
    $region3: #{tpu_custom_call.1} parent=1 // pred_check_branch
      %9 = sbr.rel (0) target = $region5
    $region4: #{tpu_custom_call.1} parent=1 // pred_region
      %s10 = sadd.s32 0, 0
      %12 = vsyncadd [#allocation4], 0
      %s13 = smul.addr %s10, 8
      %s14 = scalar_lea.hbm %s0, %s13
      %s15 = sshll.u32 %s14, 4
      %s16 = int_to_ptr.hbm [resolvable:$true] %s15
      %s17 = sshll.u32 [#allocation3], 4
      %s18 = int_to_ptr.vmem [resolvable:$true] %s17
      %23 = dma.hbm_to_vmem [thread:$0]  %s16, 256, %s18, [#allocation4], 128, 128, 8
    $region5: #{tpu_custom_call.1} parent=1 // pred_fallthru
      _
    // Predicated region
    $region6: #{tpu_custom_call.1} parent=1 // pred_check
      _
    $region7: #{tpu_custom_call.1} parent=1 // pred_check_branch
      %25 = sbr.rel (0) target = $region9
    $region8: #{tpu_custom_call.1} parent=1 // pred_region
      %27 = dma.done [#allocation4], 256
    $region9: #{tpu_custom_call.1} parent=1 // pred_fallthru
      _
    %s28 = sadd.s32 0, 0
    %p29 = scmp.eq.s32.totalorder 0, 0
    // Predicated region
    $region10: #{tpu_custom_call.1} parent=1 // pred_check
      %p30 = pneg %p29
    $region11: #{tpu_custom_call.1} parent=1 // pred_check_branch
      %32 = sbr.rel (%p30) target = $region13
    $region12: #{tpu_custom_call.1} parent=1 // pred_region
      %33 = vst [vmem:[#allocation2] sm:$0xff] 0.0
      %34 = vst [vmem:[#allocation2 + $0x8] sm:$0xff] 0.0
    $region13: #{tpu_custom_call.1} parent=1 // pred_fallthru
      _
    %v35 = vld [vmem:[#allocation3] sm:$0xff]
    %v36 = vld [vmem:[#allocation3 + $0x8] sm:$0xff]
    %v37 = vadd.f32 %v35, %v36
    %v38 = vrot.slane %v37, 4
    %v39 = vadd.f32 %v37, %v38
    %v40 = vrot.slane %v39, 2
    %v41 = vadd.f32 %v39, %v40
    %v42 = vrot.slane %v41, 1
    %v43 = vadd.f32 %v41, %v42
    %v44 = vmul.f32 %v43, 0.0625
    %v45 = vld [vmem:[#allocation2] sm:$0xff]
    %v46 = vld [vmem:[#allocation2 + $0x8] sm:$0xff]
    %v47 = vsub.f32 %v35, %v44
    %v48 = vsub.f32 %v36, %v44
    %v49 = vand.u32 2147483647, %v47
    %v50 = vand.u32 2147483647, %v48
    %v51 = vadd.f32 %v45, %v49
    %v52 = vadd.f32 %v46, %v50
    %53 = vst [vmem:[#allocation2] sm:$0xff] %v51
    %54 = vst [vmem:[#allocation2 + $0x8] sm:$0xff] %v52
    // Predicated region
    $region14: #{tpu_custom_call.1} parent=1 // pred_check
      %p55 = pneg %p29
    $region15: #{tpu_custom_call.1} parent=1 // pred_check_branch
      %57 = sbr.rel (%p55) target = $region17
    $region16: #{tpu_custom_call.1} parent=1 // pred_region
      %v58 = vld [vmem:[#allocation2] sm:$0xff]
      %v59 = vld [vmem:[#allocation2 + $0x8] sm:$0xff]
      %v60 = vadd.f32 %v58, %v59
      %61 = vst [vmem:[#allocation6] sm:$0xff] %v60
    $region17: #{tpu_custom_call.1} parent=1 // pred_fallthru
      _
    // Predicated region
    $region18: #{tpu_custom_call.1} parent=1 // pred_check
      _
    $region19: #{tpu_custom_call.1} parent=1 // pred_check_branch
      %63 = sbr.rel (0) target = $region21
    $region20: #{tpu_custom_call.1} parent=1 // pred_region
      %65 = vsyncadd [#allocation5], 0
      %s67 = sshll.u32 [#allocation6], 4
      %s68 = int_to_ptr.vmem [resolvable:$true] %s67
      %s69 = sshll.u32 %s1, 4
      %s70 = int_to_ptr.hbm [resolvable:$true] %s69
      %72 = dma.vmem_to_hbm [thread:$0]  %s68, 128, %s70, [#allocation5]
    $region21: #{tpu_custom_call.1} parent=1 // pred_fallthru
      _
    // Predicated region
    $region22: #{tpu_custom_call.1} parent=1 // pred_check
      _
    $region23: #{tpu_custom_call.1} parent=1 // pred_check_branch
      %74 = sbr.rel (0) target = $region25
    $region24: #{tpu_custom_call.1} parent=1 // pred_region
      %76 = dma.done [#allocation5], 128
    $region25: #{tpu_custom_call.1} parent=1 // pred_fallthru
      _
    %77 = vsyncpa [#allocation4], 1
    %78 = vsyncpa [#allocation5], 1

</llo_original>
